<compile_context>
chip_gen: v7x
topology: tpu7x:2x2x1
jax: 0.10.0
libtpu: 0.0.40
codegen_flags: <defaults>
</compile_context>

<pallas_src>
import math
import functools

import jax
import jax.numpy as jnp
from jax.experimental import pallas as pl
from jax.experimental.pallas import tpu as pltpu

_LANES = 128


def _same_pad_kernel(x_ref, o_ref, *, pad_top, pad_bottom, pad_left, pad_right,
                     in_h, in_w):
    """Writes one padded (b_blk, hp, wp) tile; every element stored exactly once."""
    b_blk, hp, wp = o_ref.shape
    dt = o_ref.dtype
    x = x_ref[...]

    if (pad_left or pad_right) and wp % _LANES == 0:
        # Lane-dense output: build the W-padded band in-register and issue one
        # full-width (unmasked) store for the whole interior row band.
        parts = []
        if pad_left:
            parts.append(jnp.zeros((b_blk, in_h, pad_left), dt))
        parts.append(x)
        if pad_right:
            parts.append(jnp.zeros((b_blk, in_h, pad_right), dt))
        o_ref[:, pad_top:pad_top + in_h, :] = jnp.concatenate(parts, axis=-1)
    else:
        # Narrow / unaligned wp: stores are masked either way; copy the interior
        # once and zero only the thin left/right borders (no zero-then-overwrite).
        o_ref[:, pad_top:pad_top + in_h, pad_left:pad_left + in_w] = x
        if pad_left:
            o_ref[:, pad_top:pad_top + in_h, 0:pad_left] = jnp.zeros(
                (b_blk, in_h, pad_left), dt)
        if pad_right:
            o_ref[:, pad_top:pad_top + in_h, pad_left + in_w:wp] = jnp.zeros(
                (b_blk, in_h, pad_right), dt)

    if pad_top:
        o_ref[:, 0:pad_top, :] = jnp.zeros((b_blk, pad_top, wp), dt)
    if pad_bottom:
        o_ref[:, pad_top + in_h:hp, :] = jnp.zeros((b_blk, pad_bottom, wp), dt)


def _round_up(v, m):
    return ((v + m - 1) // m) * m


def _tiled_slice_bytes(h, w, dtype):
    """Real VMEM footprint of one (h, w) slice after (sublane, 128-lane) tiling."""
    itemsize = jnp.dtype(dtype).itemsize
    sublanes = max(8, 32 // itemsize)          # f32: 8, bf16: 16, int8/fp8: 32
    return _round_up(h, sublanes) * _round_up(w, _LANES) * itemsize


def _generation_params():
    """(vmem_budget_bytes, vmem_limit_bytes, min_grid_steps) per TPU generation."""
    try:
        kind = jax.devices()[0].device_kind.lower()
    except Exception:
        kind = ""
    if any(tag in kind for tag in ("v5", "v6")):
        # Single TensorCore, 128 MiB physical VMEM: fewer, larger DMAs win.
        return 32 * 1024 * 1024, 64 * 1024 * 1024, 1
    # v7x (64 MiB VMEM per TC, 2 TCs) or unknown: conservative budget (safe on
    # every generation) and >= 2 grid steps so both TensorCores get work.
    return 24 * 1024 * 1024, 48 * 1024 * 1024, 2


class Conv2dSamePad:
    """JAX / Pallas port of the PyTorch Conv2dSamePad module (padding only)."""

    def __init__(self, kernel_size, stride, use_pallas=None):
        self.kernel_size = (list(kernel_size) if isinstance(kernel_size, (list, tuple))
                            else [kernel_size, kernel_size])
        self.stride = (list(stride) if isinstance(stride, (list, tuple))
                       else [stride, stride])
        # None: auto (Pallas only when the padded width is lane-dense).
        self.use_pallas = use_pallas

    def __call__(self, x):
        n, c, in_h, in_w = x.shape
        out_h = math.ceil(float(in_h) / float(self.stride[0]))
        out_w = math.ceil(float(in_w) / float(self.stride[1]))
        pad_along_h = (out_h - 1) * self.stride[0] + self.kernel_size[0] - in_h
        pad_along_w = (out_w - 1) * self.stride[1] + self.kernel_size[1] - in_w
        pad_top = int(math.floor(pad_along_h / 2))
        pad_left = int(math.floor(pad_along_w / 2))
        pad_bottom = int(pad_along_h - pad_top)
        pad_right = int(pad_along_w - pad_left)

        # F.pad semantics: a negative pad amount crops the corresponding side.
        crop_t, crop_b = max(0, -pad_top), max(0, -pad_bottom)
        crop_l, crop_r = max(0, -pad_left), max(0, -pad_right)
        if crop_t or crop_b or crop_l or crop_r:
            x = x[:, :, crop_t:in_h - crop_b, crop_l:in_w - crop_r]
            in_h -= crop_t + crop_b
            in_w -= crop_l + crop_r
        pad_top, pad_bottom = max(0, pad_top), max(0, pad_bottom)
        pad_left, pad_right = max(0, pad_left), max(0, pad_right)

        # Early exit: nothing to pad -> no kernel launch, no HBM round trip.
        if pad_top == 0 and pad_bottom == 0 and pad_left == 0 and pad_right == 0:
            return x

        hp = in_h + pad_top + pad_bottom
        wp = in_w + pad_left + pad_right

        # Lane-density guard: padded width below one lane group wastes most of
        # every vreg / DMA burst and forces masked stores; XLA's native pad is
        # the better tool there (override with use_pallas=True).
        use_pallas = self.use_pallas
        if use_pallas is None:
            use_pallas = wp >= _LANES

        vmem_budget, vmem_limit, min_steps = _generation_params()
        itemsize = jnp.dtype(x.dtype).itemsize
        # Double-buffered in + out tile bytes per folded (N*C) row, using the
        # real (sublane, 128-lane)-tiled VMEM footprint.
        per_row_bytes = 2 * (_tiled_slice_bytes(in_h, in_w, x.dtype) +
                             _tiled_slice_bytes(hp, wp, x.dtype))
        if per_row_bytes > vmem_budget:
            # TODO(synk): spatial tiling with pad-offset-aware index maps for
            # very large H*W; degrade gracefully to XLA's pad instead of failing.
            use_pallas = False

        if not use_pallas:
            return jnp.pad(
                x, ((0, 0), (0, 0), (pad_top, pad_bottom), (pad_left, pad_right)))

        # Fold N and C into one contiguous rows axis (free row-major reshape).
        total_rows = n * c
        x2 = x.reshape(total_rows, in_h, in_w)

        # Largest block that fits the budget, keeping >= min_steps grid steps
        # (when possible) so both v7x TensorCores get work.  cdiv grid with a
        # ragged last block: safe for a pure copy (OOB writes are masked).
        b_blk = max(1, min(total_rows, vmem_budget // per_row_bytes))
        if min_steps > 1:
            b_blk = max(1, min(b_blk, pl.cdiv(total_rows, min_steps)))
        grid = (pl.cdiv(total_rows, b_blk),)

        kernel = functools.partial(
            _same_pad_kernel,
            pad_top=pad_top, pad_bottom=pad_bottom,
            pad_left=pad_left, pad_right=pad_right,
            in_h=in_h, in_w=in_w,
        )

        bytes_accessed = (total_rows * in_h * in_w + total_rows * hp * wp) * itemsize

        out2 = pl.pallas_call(
            kernel,
            out_shape=jax.ShapeDtypeStruct((total_rows, hp, wp), x.dtype),
            grid_spec=pltpu.PrefetchScalarGridSpec(
                num_scalar_prefetch=0,
                grid=grid,
                in_specs=[pl.BlockSpec((b_blk, in_h, in_w), lambda i: (i, 0, 0))],
                out_specs=pl.BlockSpec((b_blk, hp, wp), lambda i: (i, 0, 0)),
            ),
            compiler_params=pltpu.CompilerParams(
                dimension_semantics=("parallel",),
                vmem_limit_bytes=vmem_limit,
            ),
            cost_estimate=pl.CostEstimate(
                flops=0, transcendentals=0, bytes_accessed=bytes_accessed),
        )(x2)

        return out2.reshape(n, c, hp, wp)


def _reference_same_pad(x, kernel_size, stride):
    """Plain-JAX reference with the exact PyTorch-module arithmetic."""
    kh, kw = kernel_size
    sh, sw = stride
    _, _, h, w = x.shape
    oh = math.ceil(float(h) / float(sh))
    ow = math.ceil(float(w) / float(sw))
    ph = (oh - 1) * sh + kh - h
    pw = (ow - 1) * sw + kw - w
    pt, pleft = math.floor(ph / 2), math.floor(pw / 2)
    pb, pright = ph - pt, pw - pleft
    # F.pad: negative pad crops.
    x = x[:, :, max(0, -pt):h - max(0, -pb), max(0, -pleft):w - max(0, -pright)]
    return jnp.pad(x, ((0, 0), (0, 0),
                       (max(0, pt), max(0, pb)),
                       (max(0, pleft), max(0, pright))))


if __name__ == "__main__":
    key = jax.random.PRNGKey(0)
    k0, k1 = jax.random.split(key)

    # Case 1: lane-dense Pallas path (padded output is 128x128).
    x1 = jax.random.normal(k0, (2, 4, 126, 128), dtype=jnp.float32)
    m1 = Conv2dSamePad(kernel_size=(3, 1), stride=(1, 1))
    out1 = jax.block_until_ready(m1(x1))
    ref1 = _reference_same_pad(x1, (3, 1), (1, 1))
    assert out1.shape == ref1.shape == (2, 4, 128, 128), (out1.shape, ref1.shape)
    assert bool(jnp.array_equal(out1, ref1)), "case1: lane-dense Pallas mismatch"

    # Case 2: the spec's canonical small input, forced through the Pallas path.
    x2 = jax.random.normal(k1, (2, 4, 16, 16), dtype=jnp.float32)
    m2 = Conv2dSamePad(kernel_size=3, stride=2, use_pallas=True)
    out2 = jax.block_until_ready(m2(x2))
    ref2 = _reference_same_pad(x2, (3, 3), (2, 2))
    assert out2.shape == ref2.shape == (2, 4, 17, 17), (out2.shape, ref2.shape)
    assert bool(jnp.array_equal(out2, ref2)), "case2: forced Pallas mismatch"

    # Case 3: same input through the default path (narrow W -> XLA pad fallback).
    m3 = Conv2dSamePad(kernel_size=3, stride=2)
    out3 = jax.block_until_ready(m3(x2))
    assert bool(jnp.array_equal(out3, ref2)), "case3: fallback mismatch"

    # Case 4: zero padding -> early exit, no kernel launch.
    m4 = Conv2dSamePad(kernel_size=1, stride=1)
    out4 = jax.block_until_ready(m4(x2))
    assert out4.shape == x2.shape and bool(jnp.array_equal(out4, x2)), "case4"

    # Case 5: negative 'pad' (kernel < stride) crops, matching F.pad semantics.
    x5 = x2[:, :2, :15, :15]
    m5 = Conv2dSamePad(kernel_size=1, stride=4)
    out5 = jax.block_until_ready(m5(x5))
    ref5 = _reference_same_pad(x5, (1, 1), (4, 4))
    assert out5.shape == ref5.shape and bool(jnp.array_equal(out5, ref5)), "case5"

    print("KERNEL_OK")
</pallas_src>

<mosaic_0001>
module attributes {stable_mosaic.version = 11 : i64} {
  func.func @_same_pad_kernel(%arg0: i32, %arg1: memref<4x126x128xf32, #tpu.memory_space<vmem>>, %arg2: memref<4x128x128xf32, #tpu.memory_space<vmem>>) attributes {dimension_semantics = [#tpu.dimension_semantics<parallel>], iteration_bounds = array<i64: 2>, scalar_prefetch = 0 : i64, scratch_operands = 0 : i64, tpu.core_type = #tpu.core_type<tc>, window_params = [{transform_indices = @transform_0, window_bounds = array<i64: 4, 126, 128>}, {transform_indices = @transform_1, window_bounds = array<i64: 4, 128, 128>}]} {
    %c0 = arith.constant 0 : index
    %c0_0 = arith.constant 0 : index
    %c0_1 = arith.constant 0 : index
    %0 = vector.load %arg1[%c0, %c0_0, %c0_1] : memref<4x126x128xf32, #tpu.memory_space<vmem>>, vector<4x126x128xf32>
    %c0_2 = arith.constant 0 : index
    %c1 = arith.constant 1 : index
    %c0_3 = arith.constant 0 : index
    %1 = vector.load %arg2[%c0_2, %c1, %c0_3] : memref<4x128x128xf32, #tpu.memory_space<vmem>>, vector<4x126x128xf32>
    tpu.vector_store %arg2[%c0_2, %c1, %c0_3], %0 {strides = array<i32>} : memref<4x128x128xf32, #tpu.memory_space<vmem>>, vector<4x126x128xf32>,
    %cst = arith.constant 0.000000e+00 : f32
    %2 = vector.broadcast %cst : f32 to vector<4x1x128xf32>
    %c0_4 = arith.constant 0 : index
    %c0_5 = arith.constant 0 : index
    %c0_6 = arith.constant 0 : index
    %3 = vector.load %arg2[%c0_4, %c0_5, %c0_6] : memref<4x128x128xf32, #tpu.memory_space<vmem>>, vector<4x1x128xf32>
    tpu.vector_store %arg2[%c0_4, %c0_5, %c0_6], %2 {strides = array<i32>} : memref<4x128x128xf32, #tpu.memory_space<vmem>>, vector<4x1x128xf32>,
    %cst_7 = arith.constant 0.000000e+00 : f32
    %4 = vector.broadcast %cst_7 : f32 to vector<4x1x128xf32>
    %c0_8 = arith.constant 0 : index
    %c127 = arith.constant 127 : index
    %c0_9 = arith.constant 0 : index
    %5 = vector.load %arg2[%c0_8, %c127, %c0_9] : memref<4x128x128xf32, #tpu.memory_space<vmem>>, vector<4x1x128xf32>
    tpu.vector_store %arg2[%c0_8, %c127, %c0_9], %4 {strides = array<i32>} : memref<4x128x128xf32, #tpu.memory_space<vmem>>, vector<4x1x128xf32>,
    return
  }
  func.func @transform_0(%arg0: i32) -> (i32, i32, i32) {
    %c0_i32 = arith.constant 0 : i32
    %c0_i32_0 = arith.constant 0 : i32
    %c0_i32_1 = arith.constant 0 : i32
    return %arg0, %c0_i32, %c0_i32_0 : i32, i32, i32
  }
  func.func @transform_1(%arg0: i32) -> (i32, i32, i32) {
    %c0_i32 = arith.constant 0 : i32
    %c0_i32_0 = arith.constant 0 : i32
    %c0_i32_1 = arith.constant 0 : i32
    return %arg0, %c0_i32, %c0_i32_0 : i32, i32, i32
  }
}

</mosaic_0001>

<llo_original>
// kernel: tpu_custom_call.1
$region0: #{tpu_custom_call.1}
  #allocation0 [shape = 'u32[]', space=smem, size = 0x4, offset = 0x4, fixed_abs, tag = 'smem constant byte address 0x4 - core index']
  #allocation1 [shape = 'u32[144,128]{1,0:T(1,128)}', space=vmem, size = 0x12000, scoped, tag = 'internal scratch']
  %s0 = inlined_call_operand.vmem [shape: f32[8,126,128], index: 0, kind: input, shape index: {}]
  %s1 = inlined_call_operand.hbm [shape: f32[8,128,128], index: 1, kind: output, shape index: {}]
  %s2 = sld [smem:[#allocation0]]
  $region37: #{tpu_custom_call.1} parent=0
    _
  %s4 = ssub.s32 1, %s2
  %s5 = scalar_select 0, %s4, %s2
  $region1: #{tpu_custom_call.1} parent=0
    #allocation2 [shape = 'u8[524288]{0}', space=vmem, size = 0x80000, scoped, tag = 'output window, operand 0']
    #allocation3 [shape = 's32[2]{0}', space=sflag, size = 0x8, scoped, tag = 'scoped memory for tpu_custom_call.1']
    %6 = vsyncpa [#allocation3], 0
    %s7 = scalar_lea.sflag [#allocation3], 1
    %8 = vsyncpa %s7, 0
    loop: start=0, step=1, limit=4
    $region2: #{tpu_custom_call.1} parent=1 // loop_pre_header
      _
    $region3: #{tpu_custom_call.1} parent=1 // loop_header
      %s10 = sphi 0, %s14
      %p11 = scmp.ge.s32.totalorder %s10, 4
      %s20 = sphi 0, %s22
      %s23 = sphi 0, %s20
      %s24 = sphi 0, %s23
      %s40 = sphi 0, %s24
      %s46 = sphi 0, %s48
      %s49 = sphi 0, %s46
      %s50 = sphi 0, %s49
      %s66 = sphi 0, %s50
    $region4: #{tpu_custom_call.1} parent=1 // loop_header_branch
      %13 = sbr.rel (%p11) target = $region8
    $region5: #{tpu_custom_call.1} parent=1 // loop_body
      %s15 = ssub.s32 %s10, 1
      %s16 = ssub.s32 %s10, 2
      %s17 = sadd.s32 %s10, 1
      %s18 = ssub.s32 %s10, %s17
      %p19 = scmp.eq.s32.totalorder %s18, 0
      %s21 = sadd.s32 %s20, 1
      %s22 = scalar_select %p19, %s20, %s21
      %p25 = pneg %p19
      %p26 = scmp.eq.s32.totalorder %s10, 1
      %p27 = por %p25, %p26
      %p28 = scmp.ne.s32.totalorder %s20, %s23
      %p29 = scmp.eq.s32.totalorder %s10, 0
      %p30 = por %p28, %p29
      %p31 = scmp.ne.s32.totalorder %s20, %s23
      %p32 = scmp.eq.s32.totalorder %s15, 1
      %p33 = por %p31, %p32
      %p34 = scmp.ne.s32.totalorder %s23, %s24
      %p35 = scmp.eq.s32.totalorder %s15, 0
      %p36 = por %p34, %p35
      %p37 = scmp.ne.s32.totalorder %s23, %s24
      %p38 = scmp.eq.s32.totalorder %s16, 1
      %p39 = por %p37, %p38
      %p41 = scmp.ne.s32.totalorder %s24, %s40
      %p42 = scmp.eq.s32.totalorder %s16, 0
      %p43 = por %p41, %p42
      %s44 = ssub.s32 %s10, %s17
      %p45 = scmp.eq.s32.totalorder %s44, 0
      %s47 = sadd.s32 %s46, 1
      %s48 = scalar_select %p45, %s46, %s47
      %p51 = pneg %p45
      %p52 = scmp.eq.s32.totalorder %s10, 1
      %p53 = por %p51, %p52
      %p54 = scmp.ne.s32.totalorder %s46, %s49
      %p55 = scmp.eq.s32.totalorder %s10, 0
      %p56 = por %p54, %p55
      %p57 = scmp.ne.s32.totalorder %s46, %s49
      %p58 = scmp.eq.s32.totalorder %s15, 1
      %p59 = por %p57, %p58
      %p60 = scmp.ne.s32.totalorder %s49, %s50
      %p61 = scmp.eq.s32.totalorder %s15, 0
      %p62 = por %p60, %p61
      %p63 = scmp.ne.s32.totalorder %s49, %s50
      %p64 = scmp.eq.s32.totalorder %s16, 1
      %p65 = por %p63, %p64
      %p67 = scmp.ne.s32.totalorder %s50, %s66
      %p68 = scmp.eq.s32.totalorder %s16, 0
      %p69 = por %p67, %p68
      %p70 = scmp.le.s32.totalorder 1, %s10
      %p71 = scmp.lt.s32.totalorder %s10, 3
      %p72 = pnand %p70, %p71
      %p73 = pneg %p72
      // Predicated region
      $region9: #{tpu_custom_call.1} parent=5 // pred_check
        _
      $region10: #{tpu_custom_call.1} parent=5 // pred_check_branch
        %75 = sbr.rel (%p72) target = $region12
      $region11: #{tpu_custom_call.1} parent=5 // pred_region
        %s76 = ssub.s32 %s10, 1
      $region12: #{tpu_custom_call.1} parent=5 // pred_fallthru
        _
      %p77 = scmp.lt.s32.totalorder %s10, 2
      // Predicated region
      $region13: #{tpu_custom_call.1} parent=5 // pred_check
        %p78 = pneg %p77
      $region14: #{tpu_custom_call.1} parent=5 // pred_check_branch
        %80 = sbr.rel (%p78) target = $region16
      $region15: #{tpu_custom_call.1} parent=5 // pred_region
        // Predicated region
        $region17: #{tpu_custom_call.1} parent=15 // pred_check
          %p81 = pneg %p30
        $region18: #{tpu_custom_call.1} parent=15 // pred_check_branch
          %83 = sbr.rel (%p81) target = $region20
        $region19: #{tpu_custom_call.1} parent=15 // pred_region
          %s84 = smul.u32 4, %s10
          %p85 = scmp.lt.s32.totalorder %s84, 7
          %s86 = scalar_select %p85, %s84, 7
          %s87 = smul.addr %s86, 16
          %s88 = smul.addr %s87, 8
          %s89 = scalar_lea.vmem %s0, %s88
          %s90 = smul.u32 4, %s10
        $region20: #{tpu_custom_call.1} parent=15 // pred_fallthru
          _
      $region16: #{tpu_custom_call.1} parent=5 // pred_fallthru
        _
      %p91 = scmp.le.s32.totalorder 1, %s10
      %p92 = scmp.lt.s32.totalorder %s10, 3
      %p93 = pnand %p91, %p92
      %p94 = pneg %p93
      // Predicated region
      $region21: #{tpu_custom_call.1} parent=5 // pred_check
        _
      $region22: #{tpu_custom_call.1} parent=5 // pred_check_branch
        %96 = sbr.rel (%p93) target = $region24
      $region23: #{tpu_custom_call.1} parent=5 // pred_region
        %s97 = ssub.s32 %s10, 1
        %s98 = smul.u32 4, %s15
        %p99 = scmp.lt.s32.totalorder %s98, 7
        %s100 = scalar_select %p99, %s98, 7
        %s101 = smul.addr %s100, 16
        %s102 = smul.addr %s101, 8
        %s103 = scalar_lea.vmem %s0, %s102
        %p104 = pneg %p36
        %p105 = pneg %p33
        %p106 = pneg %p62
        %p107 = pneg %p59
        %s108 = sand.u32 %s49, 1
        %s109 = scalar_lea.sflag [#allocation3], %s108
        %s110 = sand.u32 %s49, 1
        %s111 = smul.addr %s110, 512
        %s112 = scalar_lea.vmem [#allocation2], %s111
        %s113 = smul.u32 4, %s15
        %p114 = scmp.lt.s32.totalorder %s113, 7
        %s115 = scalar_select %p114, %s113, 7
        %s116 = smul.addr %s115, 16
        %s117 = smul.addr %s116, 8
        %s118 = scalar_lea.vmem %s0, %s117
        %s119 = smul.u32 4, %s15
        %s120 = smul.u32 4, %s15
        %v121 = vld [vmem:[%s118] sm:$0xff]
        %v122 = vld [vmem:[%s118 + $0x8] sm:$0xff]
        %v123 = vld [vmem:[%s118 + $0x10] sm:$0xff]
        %v124 = vld [vmem:[%s118 + $0x18] sm:$0xff]
        %v125 = vld [vmem:[%s118 + $0x20] sm:$0xff]
        %v126 = vld [vmem:[%s118 + $0x28] sm:$0xff]
        %v127 = vld [vmem:[%s118 + $0x30] sm:$0xff]
        %v128 = vld [vmem:[%s118 + $0x38] sm:$0xff]
        %v129 = vld [vmem:[%s118 + $0x40] sm:$0xff]
        %v130 = vld [vmem:[%s118 + $0x48] sm:$0xff]
        %v131 = vld [vmem:[%s118 + $0x50] sm:$0xff]
        %v132 = vld [vmem:[%s118 + $0x58] sm:$0xff]
        %v133 = vld [vmem:[%s118 + $0x60] sm:$0xff]
        %v134 = vld [vmem:[%s118 + $0x68] sm:$0xff]
        %v135 = vld [vmem:[%s118 + $0x70] sm:$0xff]
        %v136 = vld [vmem:[%s118 + $0x78] sm:$0x3f]
        %v137 = vld [vmem:[%s118 + $0x80] sm:$0xff]
        %v138 = vld [vmem:[%s118 + $0x88] sm:$0xff]
        %v139 = vld [vmem:[%s118 + $0x90] sm:$0xff]
        %v140 = vld [vmem:[%s118 + $0x98] sm:$0xff]
        %v141 = vld [vmem:[%s118 + $0xa0] sm:$0xff]
        %v142 = vld [vmem:[%s118 + $0xa8] sm:$0xff]
        %v143 = vld [vmem:[%s118 + $0xb0] sm:$0xff]
        %v144 = vld [vmem:[%s118 + $0xb8] sm:$0xff]
        %v145 = vld [vmem:[%s118 + $0xc0] sm:$0xff]
        %v146 = vld [vmem:[%s118 + $0xc8] sm:$0xff]
        %v147 = vld [vmem:[%s118 + $0xd0] sm:$0xff]
        %v148 = vld [vmem:[%s118 + $0xd8] sm:$0xff]
        %v149 = vld [vmem:[%s118 + $0xe0] sm:$0xff]
        %v150 = vld [vmem:[%s118 + $0xe8] sm:$0xff]
        %v151 = vld [vmem:[%s118 + $0xf0] sm:$0xff]
        %v152 = vld [vmem:[%s118 + $0xf8] sm:$0x3f]
        %v153 = vld [vmem:[%s118 + $0x100] sm:$0xff]
        %v154 = vld [vmem:[%s118 + $0x108] sm:$0xff]
        %v155 = vld [vmem:[%s118 + $0x110] sm:$0xff]
        %v156 = vld [vmem:[%s118 + $0x118] sm:$0xff]
        %v157 = vld [vmem:[%s118 + $0x120] sm:$0xff]
        %v158 = vld [vmem:[%s118 + $0x128] sm:$0xff]
        %v159 = vld [vmem:[%s118 + $0x130] sm:$0xff]
        %v160 = vld [vmem:[%s118 + $0x138] sm:$0xff]
        %v161 = vld [vmem:[%s118 + $0x140] sm:$0xff]
        %v162 = vld [vmem:[%s118 + $0x148] sm:$0xff]
        %v163 = vld [vmem:[%s118 + $0x150] sm:$0xff]
        %v164 = vld [vmem:[%s118 + $0x158] sm:$0xff]
        %v165 = vld [vmem:[%s118 + $0x160] sm:$0xff]
        %v166 = vld [vmem:[%s118 + $0x168] sm:$0xff]
        %v167 = vld [vmem:[%s118 + $0x170] sm:$0xff]
        %v168 = vld [vmem:[%s118 + $0x178] sm:$0x3f]
        %v169 = vld [vmem:[%s118 + $0x180] sm:$0xff]
        %v170 = vld [vmem:[%s118 + $0x188] sm:$0xff]
        %v171 = vld [vmem:[%s118 + $0x190] sm:$0xff]
        %v172 = vld [vmem:[%s118 + $0x198] sm:$0xff]
        %v173 = vld [vmem:[%s118 + $0x1a0] sm:$0xff]
        %v174 = vld [vmem:[%s118 + $0x1a8] sm:$0xff]
        %v175 = vld [vmem:[%s118 + $0x1b0] sm:$0xff]
        %v176 = vld [vmem:[%s118 + $0x1b8] sm:$0xff]
        %v177 = vld [vmem:[%s118 + $0x1c0] sm:$0xff]
        %v178 = vld [vmem:[%s118 + $0x1c8] sm:$0xff]
        %v179 = vld [vmem:[%s118 + $0x1d0] sm:$0xff]
        %v180 = vld [vmem:[%s118 + $0x1d8] sm:$0xff]
        %v181 = vld [vmem:[%s118 + $0x1e0] sm:$0xff]
        %v182 = vld [vmem:[%s118 + $0x1e8] sm:$0xff]
        %v183 = vld [vmem:[%s118 + $0x1f0] sm:$0xff]
        %v184 = vld [vmem:[%s118 + $0x1f8] sm:$0x3f]
        %185 = vst [vmem:[%s112 + $0x1] sm:$0xff] %v121
        %186 = vst [vmem:[%s112 + $0x9] sm:$0xff] %v122
        %187 = vst [vmem:[%s112 + $0x11] sm:$0xff] %v123
        %188 = vst [vmem:[%s112 + $0x19] sm:$0xff] %v124
        %189 = vst [vmem:[%s112 + $0x21] sm:$0xff] %v125
        %190 = vst [vmem:[%s112 + $0x29] sm:$0xff] %v126
        %191 = vst [vmem:[%s112 + $0x31] sm:$0xff] %v127
        %192 = vst [vmem:[%s112 + $0x39] sm:$0xff] %v128
        %193 = vst [vmem:[%s112 + $0x41] sm:$0xff] %v129
        %194 = vst [vmem:[%s112 + $0x49] sm:$0xff] %v130
        %195 = vst [vmem:[%s112 + $0x51] sm:$0xff] %v131
        %196 = vst [vmem:[%s112 + $0x59] sm:$0xff] %v132
        %197 = vst [vmem:[%s112 + $0x61] sm:$0xff] %v133
        %198 = vst [vmem:[%s112 + $0x69] sm:$0xff] %v134
        %199 = vst [vmem:[%s112 + $0x71] sm:$0xff] %v135
        %200 = vst [vmem:[%s112 + $0x79] sm:$0x3f] %v136
        %201 = vst [vmem:[%s112 + $0x81] sm:$0xff] %v137
        %202 = vst [vmem:[%s112 + $0x89] sm:$0xff] %v138
        %203 = vst [vmem:[%s112 + $0x91] sm:$0xff] %v139
        %204 = vst [vmem:[%s112 + $0x99] sm:$0xff] %v140
        %205 = vst [vmem:[%s112 + $0xa1] sm:$0xff] %v141
        %206 = vst [vmem:[%s112 + $0xa9] sm:$0xff] %v142
        %207 = vst [vmem:[%s112 + $0xb1] sm:$0xff] %v143
        %208 = vst [vmem:[%s112 + $0xb9] sm:$0xff] %v144
        %209 = vst [vmem:[%s112 + $0xc1] sm:$0xff] %v145
        %210 = vst [vmem:[%s112 + $0xc9] sm:$0xff] %v146
        %211 = vst [vmem:[%s112 + $0xd1] sm:$0xff] %v147
        %212 = vst [vmem:[%s112 + $0xd9] sm:$0xff] %v148
        %213 = vst [vmem:[%s112 + $0xe1] sm:$0xff] %v149
        %214 = vst [vmem:[%s112 + $0xe9] sm:$0xff] %v150
        %215 = vst [vmem:[%s112 + $0xf1] sm:$0xff] %v151
        %216 = vst [vmem:[%s112 + $0xf9] sm:$0x3f] %v152
        %217 = vst [vmem:[%s112 + $0x101] sm:$0xff] %v153
        %218 = vst [vmem:[%s112 + $0x109] sm:$0xff] %v154
        %219 = vst [vmem:[%s112 + $0x111] sm:$0xff] %v155
        %220 = vst [vmem:[%s112 + $0x119] sm:$0xff] %v156
        %221 = vst [vmem:[%s112 + $0x121] sm:$0xff] %v157
        %222 = vst [vmem:[%s112 + $0x129] sm:$0xff] %v158
        %223 = vst [vmem:[%s112 + $0x131] sm:$0xff] %v159
        %224 = vst [vmem:[%s112 + $0x139] sm:$0xff] %v160
        %225 = vst [vmem:[%s112 + $0x141] sm:$0xff] %v161
        %226 = vst [vmem:[%s112 + $0x149] sm:$0xff] %v162
        %227 = vst [vmem:[%s112 + $0x151] sm:$0xff] %v163
        %228 = vst [vmem:[%s112 + $0x159] sm:$0xff] %v164
        %229 = vst [vmem:[%s112 + $0x161] sm:$0xff] %v165
        %230 = vst [vmem:[%s112 + $0x169] sm:$0xff] %v166
        %231 = vst [vmem:[%s112 + $0x171] sm:$0xff] %v167
        %232 = vst [vmem:[%s112 + $0x179] sm:$0x3f] %v168
        %233 = vst [vmem:[%s112 + $0x181] sm:$0xff] %v169
        %234 = vst [vmem:[%s112 + $0x189] sm:$0xff] %v170
        %235 = vst [vmem:[%s112 + $0x191] sm:$0xff] %v171
        %236 = vst [vmem:[%s112 + $0x199] sm:$0xff] %v172
        %237 = vst [vmem:[%s112 + $0x1a1] sm:$0xff] %v173
        %238 = vst [vmem:[%s112 + $0x1a9] sm:$0xff] %v174
        %239 = vst [vmem:[%s112 + $0x1b1] sm:$0xff] %v175
        %240 = vst [vmem:[%s112 + $0x1b9] sm:$0xff] %v176
        %241 = vst [vmem:[%s112 + $0x1c1] sm:$0xff] %v177
        %242 = vst [vmem:[%s112 + $0x1c9] sm:$0xff] %v178
        %243 = vst [vmem:[%s112 + $0x1d1] sm:$0xff] %v179
        %244 = vst [vmem:[%s112 + $0x1d9] sm:$0xff] %v180
        %245 = vst [vmem:[%s112 + $0x1e1] sm:$0xff] %v181
        %246 = vst [vmem:[%s112 + $0x1e9] sm:$0xff] %v182
        %247 = vst [vmem:[%s112 + $0x1f1] sm:$0xff] %v183
        %248 = vst [vmem:[%s112 + $0x1f9] sm:$0x3f] %v184
        %249 = vst [vmem:[%s112] sm:$0x1] 0.0
        %250 = vst [vmem:[%s112 + $0x80] sm:$0x1] 0.0
        %251 = vst [vmem:[%s112 + $0x100] sm:$0x1] 0.0
        %252 = vst [vmem:[%s112 + $0x180] sm:$0x1] 0.0
        %253 = vst [vmem:[%s112 + $0x7f] sm:$0x1] 0.0
        %254 = vst [vmem:[%s112 + $0xff] sm:$0x1] 0.0
        %255 = vst [vmem:[%s112 + $0x17f] sm:$0x1] 0.0
        %256 = vst [vmem:[%s112 + $0x1ff] sm:$0x1] 0.0
        %s257 = sand.u32 %s49, 1
        %s258 = scalar_lea.sflag [#allocation3], %s257
        %s259 = sand.u32 %s49, 1
        %s260 = smul.addr %s259, 512
        %s261 = scalar_lea.vmem [#allocation2], %s260
        // Predicated region
        $region25: #{tpu_custom_call.1} parent=23 // pred_check
          %p262 = pneg %p59
        $region26: #{tpu_custom_call.1} parent=23 // pred_check_branch
          %264 = sbr.rel (%p262) target = $region28
        $region27: #{tpu_custom_call.1} parent=23 // pred_region
          %s265 = smul.u32 4, %s15
          %s267 = ssub.s32 8192, 8192
          %268 = vsyncadd %s258, %s267
          %s269 = smul.addr %s265, 16
          %s270 = smul.addr %s269, 128
          %s271 = scalar_lea.hbm %s1, %s270
          %s272 = sshll.u32 %s261, 4
          %s273 = int_to_ptr.vmem [resolvable:$true] %s272
          %278 = dma.vmem_to_hbm [thread:$0]  %s273, 8192, %s271, %s258, 128, 128, 8
        $region28: #{tpu_custom_call.1} parent=23 // pred_fallthru
          _
      $region24: #{tpu_custom_call.1} parent=5 // pred_fallthru
        _
      %p279 = scmp.le.s32.totalorder 2, %s10
      // Predicated region
      $region29: #{tpu_custom_call.1} parent=5 // pred_check
        %p280 = pneg %p279
      $region30: #{tpu_custom_call.1} parent=5 // pred_check_branch
        %282 = sbr.rel (%p280) target = $region32
      $region31: #{tpu_custom_call.1} parent=5 // pred_region
        %s283 = ssub.s32 %s10, 2
        // Predicated region
        $region33: #{tpu_custom_call.1} parent=31 // pred_check
          %p284 = pneg %p65
        $region34: #{tpu_custom_call.1} parent=31 // pred_check_branch
          %286 = sbr.rel (%p284) target = $region36
        $region35: #{tpu_custom_call.1} parent=31 // pred_region
          %s287 = sand.u32 %s50, 1
          %s288 = scalar_lea.sflag [#allocation3], %s287
          %s289 = sand.u32 %s50, 1
          %s290 = smul.addr %s289, 512
          %s291 = scalar_lea.vmem [#allocation2], %s290
          %292 = dma.done %s288, 8192
        $region36: #{tpu_custom_call.1} parent=31 // pred_fallthru
          _
      $region32: #{tpu_custom_call.1} parent=5 // pred_fallthru
        _
    $region6: #{tpu_custom_call.1} parent=1 // loop_footer
      %s14 = sadd.s32 1, %s10
    $region7: #{tpu_custom_call.1} parent=1 // loop_footer_branch
      %9 = sbr.rel target = $region3
    $region8: #{tpu_custom_call.1} parent=1 // loop_exit
      _
    %293 = vsyncpa [#allocation3], 1
    %s294 = scalar_lea.sflag [#allocation3], 1
    %295 = vsyncpa %s294, 1

</llo_original>
